<compile_context>
chip_gen: v7x
topology: tpu7x:2x2x1
jax: 0.10.0
libtpu: 0.0.40
codegen_flags: <defaults>
</compile_context>

<pallas_src>
import functools

import jax
import jax.numpy as jnp
from jax.experimental import pallas as pl
from jax.experimental.pallas import tpu as pltpu


def _round_up(x, m):
    return ((x + m - 1) // m) * m


def _linear_kernel_f32(x_ref, w_ref, b_ref, o_ref):
    """(tm, tk) @ (tk, tn) + b, accumulating directly into the f32 output block."""
    k = pl.program_id(2)
    partial = jax.lax.dot_general(
        x_ref[...],
        w_ref[...],
        dimension_numbers=(((1,), (0,)), ((), ())),
        preferred_element_type=jnp.float32,
    )

    @pl.when(k == 0)
    def _first():
        o_ref[...] = partial + b_ref[...].astype(jnp.float32)

    @pl.when(k > 0)
    def _rest():
        o_ref[...] += partial


def _linear_kernel_acc(x_ref, w_ref, b_ref, o_ref, acc_ref):
    """Same matmul, but with an f32 VMEM accumulator for non-f32 output dtypes."""
    k = pl.program_id(2)
    partial = jax.lax.dot_general(
        x_ref[...],
        w_ref[...],
        dimension_numbers=(((1,), (0,)), ((), ())),
        preferred_element_type=jnp.float32,
    )

    @pl.when(k == 0)
    def _first():
        acc_ref[...] = partial

    @pl.when(k > 0)
    def _rest():
        acc_ref[...] += partial

    @pl.when(k == pl.num_programs(2) - 1)
    def _finalize():
        o_ref[...] = (acc_ref[...] + b_ref[...].astype(jnp.float32)).astype(o_ref.dtype)


def prepare_linear_params(weight, bias, *, max_tk=512, max_tn=512, param_dtype=None):
    """One-time parameter prep (run OUTSIDE the per-step path).

    weight: (out_features, in_features)  -- PyTorch nn.Linear layout
    bias:   (out_features,)
    Returns (w_kn, b_row, feat_out, tk, tn) where w_kn is the pre-transposed
    (and, only if tiling requires it, zero-padded) (K_pad, N_pad) weight.
    """
    feat_out, feat_in = weight.shape

    w_kn = weight.T  # (K, N): MXU-natural RHS layout, no in-kernel transpose.
    b_row = bias.reshape(1, feat_out)
    if param_dtype is not None:
        w_kn = w_kn.astype(param_dtype)

    # If the whole contraction / output dim fits a single block, use the full
    # (possibly unaligned) dim as the tile: Pallas allows block dims equal to
    # the full array dims, so no padding is needed at all.
    tk = feat_in if feat_in <= max_tk else max_tk
    tn = feat_out if feat_out <= max_tn else max_tn
    k_pad = _round_up(feat_in, tk)
    n_pad = _round_up(feat_out, tn)

    if (k_pad, n_pad) != (feat_in, feat_out):
        w_kn = jnp.pad(w_kn, ((0, k_pad - feat_in), (0, n_pad - feat_out)))
    if n_pad != feat_out:
        b_row = jnp.pad(b_row, ((0, 0), (0, n_pad - feat_out)))
    return w_kn, b_row, feat_out, tk, tn


@functools.partial(jax.jit, static_argnames=("feat_out", "tk", "tn", "max_tm"))
def core_module_forward(x, w_kn, b_row, *, feat_out, tk, tn, max_tm=256):
    """y = x @ W^T + b, with W/b already prepared by prepare_linear_params."""
    m, k = x.shape
    k_pad, n_pad = w_kn.shape

    # M tiling: one full-size (possibly unaligned) block if it fits, otherwise
    # fixed max_tm tiles with zero-padded tail rows.
    if m <= max_tm:
        tm, m_pad = m, m
    else:
        tm, m_pad = max_tm, _round_up(m, max_tm)

    x_p = x
    if (m_pad, k_pad) != (m, k):
        x_p = jnp.pad(x, ((0, m_pad - m), (0, k_pad - k)))

    grid = (m_pad // tm, n_pad // tn, k_pad // tk)

    out_dtype = x.dtype
    cost = pl.CostEstimate(
        flops=2 * m_pad * n_pad * k_pad,
        transcendentals=0,
        bytes_accessed=(
            x_p.size * x_p.dtype.itemsize
            + w_kn.size * w_kn.dtype.itemsize
            + b_row.size * b_row.dtype.itemsize
            + m_pad * n_pad * jnp.dtype(out_dtype).itemsize
        ),
    )

    common = dict(
        out_shape=jax.ShapeDtypeStruct((m_pad, n_pad), out_dtype),
        grid=grid,
        in_specs=[
            pl.BlockSpec((tm, tk), lambda i, j, kk: (i, kk)),   # x tile
            pl.BlockSpec((tk, tn), lambda i, j, kk: (kk, j)),   # W^T tile (K, N)
            pl.BlockSpec((1, tn), lambda i, j, kk: (0, j)),     # bias row tile
        ],
        out_specs=pl.BlockSpec((tm, tn), lambda i, j, kk: (i, j)),
        compiler_params=pltpu.CompilerParams(
            dimension_semantics=("parallel", "parallel", "arbitrary"),
        ),
        cost_estimate=cost,
    )

    if out_dtype == jnp.float32:
        # Accumulate straight into the resident output block; no scratch.
        out_padded = pl.pallas_call(_linear_kernel_f32, **common)(x_p, w_kn, b_row)
    else:
        out_padded = pl.pallas_call(
            _linear_kernel_acc,
            scratch_shapes=[pltpu.VMEM((tm, tn), jnp.float32)],
            **common,
        )(x_p, w_kn, b_row)

    if (m_pad, n_pad) != (m, feat_out):
        out_padded = out_padded[:m, :feat_out]
    return out_padded


if __name__ == "__main__":
    feat_dim = 32
    batch = 8

    key = jax.random.PRNGKey(0)
    kx, kw, kb = jax.random.split(key, 3)

    # Deterministic parameter init (PyTorch-style uniform bounds).
    bound = 1.0 / (feat_dim ** 0.5)
    weight = jax.random.uniform(kw, (feat_dim, feat_dim), jnp.float32, -bound, bound)
    bias = jax.random.uniform(kb, (feat_dim,), jnp.float32, -bound, bound)
    x = jax.random.normal(kx, (batch, feat_dim), jnp.float32)

    # One-time parameter prep (transpose + any padding) outside the call path.
    w_kn, b_row, feat_out, tk, tn = prepare_linear_params(weight, bias)
    w_kn, b_row = jax.block_until_ready((w_kn, b_row))

    y = core_module_forward(x, w_kn, b_row, feat_out=feat_out, tk=tk, tn=tn)
    y = jax.block_until_ready(y)

    # Sanity check against plain-JAX reference.
    y_ref = x @ weight.T + bias
    assert y.shape == (batch, feat_dim)
    assert jnp.allclose(y, y_ref, atol=1e-5, rtol=1e-5)

    print("KERNEL_OK")
</pallas_src>

<mosaic_0001>
module attributes {stable_mosaic.version = 11 : i64} {
  func.func @_linear_kernel_f32(%arg0: i32, %arg1: i32, %arg2: i32, %arg3: memref<8x32xf32, #tpu.memory_space<vmem>>, %arg4: memref<32x32xf32, #tpu.memory_space<vmem>>, %arg5: memref<1x32xf32, #tpu.memory_space<vmem>>, %arg6: memref<8x32xf32, #tpu.memory_space<vmem>>) attributes {dimension_semantics = [#tpu.dimension_semantics<parallel>, #tpu.dimension_semantics<parallel>, #tpu.dimension_semantics<arbitrary>], iteration_bounds = array<i64: 1, 1, 1>, scalar_prefetch = 0 : i64, scratch_operands = 0 : i64, tpu.core_type = #tpu.core_type<tc>, window_params = [{transform_indices = @transform_0, window_bounds = array<i64: 8, 32>}, {transform_indices = @transform_1, window_bounds = array<i64: 32, 32>}, {transform_indices = @transform_2, window_bounds = array<i64: 1, 32>}, {transform_indices = @transform_3, window_bounds = array<i64: 8, 32>}]} {
    %c0 = arith.constant 0 : index
    %c0_0 = arith.constant 0 : index
    %0 = vector.load %arg3[%c0, %c0_0] : memref<8x32xf32, #tpu.memory_space<vmem>>, vector<8x32xf32>
    %c0_1 = arith.constant 0 : index
    %c0_2 = arith.constant 0 : index
    %1 = vector.load %arg4[%c0_1, %c0_2] : memref<32x32xf32, #tpu.memory_space<vmem>>, vector<32x32xf32>
    %cst = arith.constant dense<0.000000e+00> : vector<8x32xf32>
    %2 = tpu.matmul %0, %1, %cst {dimension_numbers = #tpu.dot_dimension_numbers<[1], [0], [0], [1], [0, 0, 1, 1], [], []>} : vector<8x32xf32>, vector<32x32xf32>, vector<8x32xf32> -> vector<8x32xf32>
    %c0_i32 = arith.constant 0 : i32
    %3 = arith.cmpi eq, %arg2, %c0_i32 : i32
    %4 = arith.extui %3 : i1 to i32
    %c0_i32_3 = arith.constant 0 : i32
    %5 = arith.cmpi ne, %4, %c0_i32_3 : i32
    scf.if %5 {
      %c0_6 = arith.constant 0 : index
      %c0_7 = arith.constant 0 : index
      %9 = vector.load %arg5[%c0_6, %c0_7] : memref<1x32xf32, #tpu.memory_space<vmem>>, vector<1x32xf32>
      %10 = vector.broadcast %9 : vector<1x32xf32> to vector<8x32xf32>
      %11 = arith.addf %2, %10 : vector<8x32xf32>
      %c0_8 = arith.constant 0 : index
      %c0_9 = arith.constant 0 : index
      %12 = vector.load %arg6[%c0_8, %c0_9] : memref<8x32xf32, #tpu.memory_space<vmem>>, vector<8x32xf32>
      tpu.vector_store %arg6[%c0_8, %c0_9], %11 {strides = array<i32>} : memref<8x32xf32, #tpu.memory_space<vmem>>, vector<8x32xf32>,
    } else {
    }
    %c0_i32_4 = arith.constant 0 : i32
    %6 = arith.cmpi sgt, %arg2, %c0_i32_4 : i32
    %7 = arith.extui %6 : i1 to i32
    %c0_i32_5 = arith.constant 0 : i32
    %8 = arith.cmpi ne, %7, %c0_i32_5 : i32
    scf.if %8 {
      %c0_6 = arith.constant 0 : index
      %c0_7 = arith.constant 0 : index
      %9 = vector.load %arg6[%c0_6, %c0_7] : memref<8x32xf32, #tpu.memory_space<vmem>>, vector<8x32xf32>
      %10 = arith.addf %9, %2 : vector<8x32xf32>
      %c0_8 = arith.constant 0 : index
      %c0_9 = arith.constant 0 : index
      %11 = vector.load %arg6[%c0_8, %c0_9] : memref<8x32xf32, #tpu.memory_space<vmem>>, vector<8x32xf32>
      tpu.vector_store %arg6[%c0_8, %c0_9], %10 {strides = array<i32>} : memref<8x32xf32, #tpu.memory_space<vmem>>, vector<8x32xf32>,
    } else {
    }
    return
  }
  func.func @transform_0(%arg0: i32, %arg1: i32, %arg2: i32) -> (i32, i32) {
    %c0_i32 = arith.constant 0 : i32
    return %arg0, %arg2 : i32, i32
  }
  func.func @transform_1(%arg0: i32, %arg1: i32, %arg2: i32) -> (i32, i32) {
    %c0_i32 = arith.constant 0 : i32
    return %arg2, %arg1 : i32, i32
  }
  func.func @transform_2(%arg0: i32, %arg1: i32, %arg2: i32) -> (i32, i32) {
    %c0_i32 = arith.constant 0 : i32
    %c0_i32_0 = arith.constant 0 : i32
    return %c0_i32, %arg1 : i32, i32
  }
  func.func @transform_3(%arg0: i32, %arg1: i32, %arg2: i32) -> (i32, i32) {
    %c0_i32 = arith.constant 0 : i32
    return %arg0, %arg1 : i32, i32
  }
}

</mosaic_0001>

<llo_original>
// kernel: core_module_forward.1
$region0: #{core_module_forward.1}
  #allocation0 [shape = 'u32[]', space=smem, size = 0x4, offset = 0x4, fixed_abs, tag = 'smem constant byte address 0x4 - core index']
  #allocation1 [shape = 'u32[144,128]{1,0:T(1,128)}', space=vmem, size = 0x12000, scoped, tag = 'internal scratch']
  %s0 = inlined_call_operand.hbm [shape: f32[8,32], index: 0, kind: input, shape index: {}]
  %s1 = inlined_call_operand.hbm [shape: f32[32,32], index: 1, kind: input, shape index: {}]
  %s2 = inlined_call_operand.vmem [shape: f32[1,32], index: 2, kind: input, shape index: {}]
  %s3 = inlined_call_operand.hbm [shape: f32[8,32], index: 3, kind: output, shape index: {}]
  %s4 = sld [smem:[#allocation0]]
  $region38: #{core_module_forward.1} parent=0
    _
  %s6 = ssub.s32 1, %s4
  %s7 = scalar_select 0, %s6, %s4
  $region1: #{core_module_forward.1} parent=0
    #allocation2 [shape = 'u8[4096]{0}', space=vmem, size = 0x1000, scoped, tag = 'input window, operand 0, single buffered']
    #allocation3 [shape = 's32[1]{0}', space=sflag, size = 0x4, scoped, tag = 'scoped memory for core_module_forward.1']
    #allocation4 [shape = 's32[1]{0}', space=sflag, size = 0x4, scoped, tag = 'scoped memory for core_module_forward.1']
    #allocation5 [shape = 'u8[16384]{0}', space=vmem, size = 0x4000, scoped, tag = 'input window, operand 1, single buffered']
    #allocation6 [shape = 's32[1]{0}', space=sflag, size = 0x4, scoped, tag = 'scoped memory for core_module_forward.1']
    #allocation7 [shape = 'u8[4096]{0}', space=vmem, size = 0x1000, scoped, tag = 'output window, operand 0, single buffered']
    %8 = vsyncpa [#allocation3], 0
    %9 = vsyncpa [#allocation6], 0
    %10 = vsyncpa [#allocation4], 0
    // Predicated region
    $region2: #{core_module_forward.1} parent=1 // pred_check
      _
    $region3: #{core_module_forward.1} parent=1 // pred_check_branch
      %12 = sbr.rel (0) target = $region5
    $region4: #{core_module_forward.1} parent=1 // pred_region
      %s14 = ssub.s32 128, 128
      %15 = vsyncadd [#allocation3], %s14
      %s17 = sshll.u32 [#allocation2], 4
      %s18 = int_to_ptr.vmem [resolvable:$true] %s17
      %20 = dma.hbm_to_vmem [thread:$0]  %s0, 128, %s18, [#allocation3]
    $region5: #{core_module_forward.1} parent=1 // pred_fallthru
      _
    // Predicated region
    $region6: #{core_module_forward.1} parent=1 // pred_check
      _
    $region7: #{core_module_forward.1} parent=1 // pred_check_branch
      %22 = sbr.rel (0) target = $region9
    $region8: #{core_module_forward.1} parent=1 // pred_region
      %s24 = ssub.s32 512, 512
      %25 = vsyncadd [#allocation6], %s24
      %s26 = sshll.u32 [#allocation5], 4
      %s27 = int_to_ptr.vmem [resolvable:$true] %s26
      %32 = dma.hbm_to_vmem [thread:$0]  %s1, 512, %s27, [#allocation6], 128, 128, 8
    $region9: #{core_module_forward.1} parent=1 // pred_fallthru
      _
    // Predicated region
    $region10: #{core_module_forward.1} parent=1 // pred_check
      _
    $region11: #{core_module_forward.1} parent=1 // pred_check_branch
      %34 = sbr.rel (0) target = $region13
    $region12: #{core_module_forward.1} parent=1 // pred_region
      _
    $region13: #{core_module_forward.1} parent=1 // pred_fallthru
      _
    // Predicated region
    $region14: #{core_module_forward.1} parent=1 // pred_check
      _
    $region15: #{core_module_forward.1} parent=1 // pred_check_branch
      %36 = sbr.rel (0) target = $region17
    $region16: #{core_module_forward.1} parent=1 // pred_region
      %37 = dma.done [#allocation3], 128
    $region17: #{core_module_forward.1} parent=1 // pred_fallthru
      _
    // Predicated region
    $region18: #{core_module_forward.1} parent=1 // pred_check
      _
    $region19: #{core_module_forward.1} parent=1 // pred_check_branch
      %39 = sbr.rel (0) target = $region21
    $region20: #{core_module_forward.1} parent=1 // pred_region
      %40 = dma.done [#allocation6], 512
    $region21: #{core_module_forward.1} parent=1 // pred_fallthru
      _
    %v41 = vld [vmem:[#allocation2] sm:$0xff]
    %v42 = vld [vmem:[#allocation5] sm:$0xff]
    %v43 = vld [vmem:[#allocation5 + $0x8] sm:$0xff]
    %v44 = vld [vmem:[#allocation5 + $0x10] sm:$0xff]
    %v45 = vld [vmem:[#allocation5 + $0x18] sm:$0xff]
    %vm46 = vcmask 261120
    %v48 = vsel %vm46, %v41, 0
    %50 = vmatprep.subr.mxu0 0.0
    %51 = vmatpush1.msra.mxu0 %v42
    %52 = vmatprep.subr.mxu0 0.0
    %53 = vmatpush1.msra.mxu0 %v43
    %54 = vmatprep.subr.mxu0 0.0
    %55 = vmatpush1.msra.mxu0 %v44
    %56 = vmatprep.subr.mxu0 0.0
    %57 = vmatpush1.msra.mxu0 %v45
    %58 = vmatprep.subr.mxu0 0.0
    %59 = vmatpush1.msra.mxu0 0.0
    %60 = vmatprep.subr.mxu0 0.0
    %61 = vmatpush1.msra.mxu0 0.0
    %62 = vmatprep.subr.mxu0 0.0
    %63 = vmatpush1.msra.mxu0 0.0
    %64 = vmatprep.subr.mxu0 0.0
    %65 = vmatpush1.msra.mxu0 0.0
    %66 = vmatprep.subr.mxu0 0.0
    %67 = vmatpush1.msra.mxu0 0.0
    %68 = vmatprep.subr.mxu0 0.0
    %69 = vmatpush1.msra.mxu0 0.0
    %70 = vmatprep.subr.mxu0 0.0
    %71 = vmatpush1.msra.mxu0 0.0
    %72 = vmatprep.subr.mxu0 0.0
    %73 = vmatpush1.msra.mxu0 0.0
    %74 = vmatprep.subr.mxu0 0.0
    %75 = vmatpush1.msra.mxu0 0.0
    %76 = vmatprep.subr.mxu0 0.0
    %77 = vmatpush1.msra.mxu0 0.0
    %78 = vmatprep.subr.mxu0 0.0
    %79 = vmatpush1.msra.mxu0 0.0
    %80 = vmatprep.subr.mxu0 0.0
    %81 = vmatpush1.msra.mxu0 0.0
    %82 = vmatprep.subr.mxu0 0.0
    %83 = vmatpush1.msra.mxu0 0.0
    %84 = vmatprep.subr.mxu0 0.0
    %85 = vmatpush1.msra.mxu0 0.0
    %86 = vmatprep.subr.mxu0 0.0
    %87 = vmatpush1.msra.mxu0 0.0
    %88 = vmatprep.subr.mxu0 0.0
    %89 = vmatpush1.msra.mxu0 0.0
    %90 = vmatprep.subr.mxu0 0.0
    %91 = vmatpush1.msra.mxu0 0.0
    %92 = vmatprep.subr.mxu0 0.0
    %93 = vmatpush1.msra.mxu0 0.0
    %94 = vmatprep.subr.mxu0 0.0
    %95 = vmatpush1.msra.mxu0 0.0
    %96 = vmatprep.subr.mxu0 0.0
    %97 = vmatpush1.msra.mxu0 0.0
    %98 = vmatprep.subr.mxu0 0.0
    %99 = vmatpush1.msra.mxu0 0.0
    %100 = vmatprep.subr.mxu0 0.0
    %101 = vmatpush1.msra.mxu0 0.0
    %102 = vmatprep.subr.mxu0 0.0
    %103 = vmatpush1.msra.mxu0 0.0
    %104 = vmatprep.subr.mxu0 0.0
    %105 = vmatpush1.msra.mxu0 0.0
    %106 = vmatprep.subr.mxu0 0.0
    %107 = vmatpush1.msra.mxu0 0.0
    %108 = vmatprep.subr.mxu0 0.0
    %109 = vmatpush1.msra.mxu0 0.0
    %110 = vmatprep.subr.mxu0 0.0
    %111 = vmatpush1.msra.mxu0 0.0
    %112 = vmatprep.subr.mxu0 0.0
    %113 = vmatpush1.msra.mxu0 0.0
    %114 = vmatprep.mubr.f32.mxu0 0.0
    %115 = vmatmul.mubr.f32.gmra.mrb[0].mxu0 %v48
    %v116 = vpop.f32.mrb[0].mxu0
    %v117 = vadd.f32 0.0, %v116
    %v118 = vpop.f32.mrb[0].mxu0
    %119 = vdwg.mxu0
    %p120 = scmp.eq.s32.totalorder 0, 0
    // Predicated region
    $region22: #{core_module_forward.1} parent=1 // pred_check
      %p121 = pneg %p120
    $region23: #{core_module_forward.1} parent=1 // pred_check_branch
      %123 = sbr.rel (%p121) target = $region25
    $region24: #{core_module_forward.1} parent=1 // pred_region
      %v124 = vld [vmem:[%s2] sm:$0x1]
      %v126 = vlaneseq
      %v127 = vshrl.u32 %v126, 7
      %v128 = vsub.s32 0, %v127
      %v129 = vrot.slane %v124, %v128
      %v131 = vadd.f32 %v117, %v129
      %132 = vst.msk [vmem:[#allocation7] sm:$0xff] %vm46, %v131
    $region25: #{core_module_forward.1} parent=1 // pred_fallthru
      _
    %p133 = scmp.gt.s32.totalorder 0, 0
    // Predicated region
    $region26: #{core_module_forward.1} parent=1 // pred_check
      %p134 = pneg %p133
    $region27: #{core_module_forward.1} parent=1 // pred_check_branch
      %136 = sbr.rel (%p134) target = $region29
    $region28: #{core_module_forward.1} parent=1 // pred_region
      %v137 = vld [vmem:[#allocation7] sm:$0xff]
      %v138 = vadd.f32 %v137, %v117
      %139 = vst.msk [vmem:[#allocation7] sm:$0xff] %vm46, %v138
    $region29: #{core_module_forward.1} parent=1 // pred_fallthru
      _
    // Predicated region
    $region30: #{core_module_forward.1} parent=1 // pred_check
      _
    $region31: #{core_module_forward.1} parent=1 // pred_check_branch
      %141 = sbr.rel (0) target = $region33
    $region32: #{core_module_forward.1} parent=1 // pred_region
      %s143 = ssub.s32 128, 128
      %144 = vsyncadd [#allocation4], %s143
      %s146 = sshll.u32 [#allocation7], 4
      %s147 = int_to_ptr.vmem [resolvable:$true] %s146
      %149 = dma.vmem_to_hbm [thread:$0]  %s147, 128, %s3, [#allocation4]
    $region33: #{core_module_forward.1} parent=1 // pred_fallthru
      _
    // Predicated region
    $region34: #{core_module_forward.1} parent=1 // pred_check
      _
    $region35: #{core_module_forward.1} parent=1 // pred_check_branch
      %151 = sbr.rel (0) target = $region37
    $region36: #{core_module_forward.1} parent=1 // pred_region
      %152 = dma.done [#allocation4], 128
    $region37: #{core_module_forward.1} parent=1 // pred_fallthru
      _
    %153 = vsyncpa [#allocation3], 1
    %154 = vsyncpa [#allocation6], 1
    %155 = vsyncpa [#allocation4], 1

</llo_original>
